<compile_context>
chip_gen: v7x
topology: tpu7x:2x2x1
jax: 0.10.0
libtpu: 0.0.40
codegen_flags: <defaults>
</compile_context>

<pallas_src>
import functools

import numpy as np

import jax
import jax.numpy as jnp
from jax.experimental import pallas as pl
from jax.experimental.pallas import tpu as pltpu


def _round_up(x, m):
    return ((x + m - 1) // m) * m


def _vmem_capacity_bytes():
    try:
        return int(pltpu.get_tpu_info().vmem_capacity_bytes)  # 64 MiB v7x, 128 MiB v5e/v6e
    except Exception:
        return 64 * 1024 * 1024                               # conservative (v7x) fallback


def _make_kernel(filter_sizes, n_filters, seq_len, dim, tb, compute_dtype,
                 neg_slope=0.01):
    f_sizes = tuple(filter_sizes)
    f_max, f_min = max(f_sizes), min(f_sizes)
    nc = len(f_sizes) * n_filters
    s_max = seq_len + 4 - f_min + 1        # longest conv output length
    pad_lo = 2                             # Conv2d padding=(2, 0)
    pad_hi = 2 + (f_max - f_min)           # extra zeros so every tap stays in range
    s_ext = pad_lo + seq_len + pad_hi

    def kernel(x_ref, w_ref, b_ref, mask_ref, pw_ref, pb_ref, out_ref, xp_ref):
        # x_ref:    (S, TB, D)       native input dtype (e.g. f32), batch-tiled
        # w_ref:    (f_max, D, NC)   compute dtype, fused conv weights (zero taps)
        # b_ref:    (1, NC) f32      fused conv bias
        # mask_ref: (s_max, 1, NC) f32  additive validity mask {0, -1e30}
        # pw_ref:   (1, NC) f32      projection weight (transposed)
        # pb_ref:   (1, 1)  f32      projection bias (SMEM scalar)
        # out_ref:  (TB, 1) f32
        # xp_ref:   (S_ext, TB, D)   compute-dtype scratch, zero-padded copy of x

        # Stage the tile into the padded scratch (cast happens here, not in HBM).
        # Zeroing the few pad rows every step is negligible and avoids any
        # first-iteration init hazard when the grid is split across TensorCores.
        xp_ref[0:pad_lo] = jnp.zeros((pad_lo, tb, dim), compute_dtype)
        xp_ref[pad_lo + seq_len:s_ext] = jnp.zeros((pad_hi, tb, dim), compute_dtype)
        xp_ref[pad_lo:pad_lo + seq_len] = x_ref[...].astype(compute_dtype)

        # Per-tap accumulation: f_max matmuls (M = s_max*TB, K = D, N = NC) with
        # f32 accumulation.  No im2col copy, no lane-axis concat.
        xk = xp_ref[0:s_max].reshape(s_max * tb, dim)
        acc = jnp.dot(xk, w_ref[0], preferred_element_type=jnp.float32)
        for kh in range(1, f_max):                                  # static unroll
            xk = xp_ref[kh:kh + s_max].reshape(s_max * tb, dim)
            acc = acc + jnp.dot(xk, w_ref[kh],
                                preferred_element_type=jnp.float32)

        # Mask invalid trailing positions of each filter with -1e30 (additive,
        # precomputed) so partial-window positions can never win the max.
        scores = acc.reshape(s_max, tb, nc) + mask_ref[...]
        pooled = jnp.max(scores, axis=0)                            # (TB, NC)

        # Bias + LeakyReLU AFTER the max: valid because (+bias) and LeakyReLU
        # with positive slope (0.01) are both monotone increasing.
        pooled = pooled + b_ref[...]
        pooled = jnp.where(pooled > 0, pooled, neg_slope * pooled)

        # Projection (NC -> 1) as a VPU multiply + lane reduction; scalar bias
        # from SMEM.
        logits = jnp.sum(pooled * pw_ref[...], axis=-1, keepdims=True) + pb_ref[0, 0]
        out_ref[...] = logits.astype(out_ref.dtype)                 # (TB, 1)

    return kernel


def _choose_batch_tile(seq_len, dim, f_sizes, n_filters, compute_dtype, in_dtype,
                       batch):
    """Largest sublane-aligned batch tile that fits the (raised) VMEM budget,
    capped so large batches split into >= 2 grid steps (v7x: 2 TensorCores)."""
    f_max, f_min = max(f_sizes), min(f_sizes)
    s_max = seq_len + 4 - f_min + 1
    s_ext = seq_len + 4 + (f_max - f_min)
    nc = len(f_sizes) * n_filters

    cdt = jnp.dtype(compute_dtype)
    align = 16 if cdt.itemsize == 2 else (32 if cdt.itemsize == 1 else 8)
    in_b = jnp.dtype(in_dtype).itemsize
    c_b = cdt.itemsize
    d_eff = _round_up(dim, 128)            # lane padding of VMEM tiles
    nc_eff = _round_up(nc, 128)

    per_row = (2 * seq_len * d_eff * in_b          # double-buffered input block
               + s_ext * d_eff * c_b               # padded scratch copy
               + s_max * d_eff * c_b               # in-flight per-tap slab
               + 2 * s_max * nc_eff * 4)           # f32 accumulator (+ headroom)

    budget = _vmem_capacity_bytes() // 3
    tb = budget // max(per_row, 1)
    tb_cap = _round_up(pl.cdiv(batch, 2), align)   # keep >=2 grid steps if possible
    tb = max(align, min(tb, tb_cap, 1024))
    return (tb // align) * align


@functools.partial(jax.jit, static_argnames=("filter_sizes", "n_filters", "compute_dtype"))
def discriminator_forward(data, params, *, filter_sizes, n_filters,
                          compute_dtype=jnp.bfloat16):
    """data: (seq_len, batch, dim) -> logits (batch,)."""
    f_sizes = tuple(filter_sizes)
    S, B, D = data.shape
    f_max, f_min = max(f_sizes), min(f_sizes)
    nc = len(f_sizes) * n_filters
    s_max = S + 4 - f_min + 1
    s_ext = S + 4 + (f_max - f_min)

    tb = _choose_batch_tile(S, D, f_sizes, n_filters, compute_dtype, data.dtype, B)

    # No wrapper-side astype / full pad pass over x.  Only truly tiny batches
    # (B < tb) get a (tiny) pad; otherwise the last tile's out-of-bounds rows
    # are garbage that is sliced off below (rows are independent).
    x = data
    if B < tb:
        x = jnp.pad(x, ((0, 0), (0, tb - B), (0, 0)))
    b_eff = max(B, tb)
    n_blocks = pl.cdiv(b_eff, tb)
    b_out = n_blocks * tb

    # Fused conv weight (f_max, D, NC): missing taps of shorter filters are zero
    # columns -> every tap's matmul produces all filters' channels.
    w_cols, b_cols = [], []
    for f in f_sizes:
        w = params[f"conv{f}_w"]                              # (f, D, n_filters)
        w_cols.append(jnp.pad(w, ((0, f_max - f), (0, 0), (0, 0))))
        b_cols.append(params[f"conv{f}_b"])                   # (1, n_filters)
    w_fused = jnp.concatenate(w_cols, axis=-1).astype(compute_dtype)  # (f_max, D, NC)
    b_fused = jnp.concatenate(b_cols, axis=-1).astype(jnp.float32)    # (1, NC)
    pw = params["proj_w"].reshape(1, nc).astype(jnp.float32)          # (1, NC)
    pb = params["proj_b"].reshape(1, 1).astype(jnp.float32)           # (1, 1)

    # Precomputed additive validity mask: positions >= each filter's valid
    # output length get -1e30 (constant folded into the jit program).
    mask_np = np.zeros((s_max, 1, nc), np.float32)
    for g, f in enumerate(f_sizes):
        s_out = S + 4 - f + 1
        mask_np[s_out:, :, g * n_filters:(g + 1) * n_filters] = -1e30
    mask = jnp.asarray(mask_np)

    vmem_limit = _vmem_capacity_bytes() // 2

    kernel = _make_kernel(f_sizes, n_filters, S, D, tb, compute_dtype)
    out = pl.pallas_call(
        kernel,
        grid=(n_blocks,),
        in_specs=[
            # If profiling on v5e still shows exposed DMA at step boundaries,
            # add pipeline_mode=pl.Buffered(3) here.
            pl.BlockSpec((S, tb, D), lambda i: (0, i, 0)),            # batch-tiled input
            pl.BlockSpec((f_max, D, nc), lambda i: (0, 0, 0)),        # resident weights
            pl.BlockSpec((1, nc), lambda i: (0, 0)),                  # conv bias
            pl.BlockSpec((s_max, 1, nc), lambda i: (0, 0, 0)),        # additive mask
            pl.BlockSpec((1, nc), lambda i: (0, 0)),                  # proj weight
            pl.BlockSpec(memory_space=pltpu.MemorySpace.SMEM),        # scalar proj bias
        ],
        out_specs=pl.BlockSpec((tb, 1), lambda i: (i, 0)),
        out_shape=jax.ShapeDtypeStruct((b_out, 1), jnp.float32),
        scratch_shapes=[pltpu.VMEM((s_ext, tb, D), compute_dtype)],   # padded x copy
        compiler_params=pltpu.CompilerParams(
            dimension_semantics=("parallel",),                        # 2 TCs on v7x
            vmem_limit_bytes=int(vmem_limit)),
    )(x, w_fused, b_fused, mask, pw, pb)
    return out[:B, 0]                                                 # squeeze(-1)


def init_params(key, dim, filter_sizes, n_filters):
    params = {}
    keys = jax.random.split(key, 2 * len(filter_sizes) + 2)
    total = len(filter_sizes) * n_filters
    for i, f in enumerate(filter_sizes):
        # PyTorch Conv2d weight is (n_filters, 1, f, dim); we store (f, dim, n_filters).
        params[f"conv{f}_w"] = (
            0.1 * jax.random.normal(keys[2 * i], (f, dim, n_filters), jnp.float32))
        params[f"conv{f}_b"] = (
            0.1 * jax.random.normal(keys[2 * i + 1], (1, n_filters), jnp.float32))
    params["proj_w"] = 0.1 * jax.random.normal(keys[-2], (total, 1), jnp.float32)
    params["proj_b"] = 0.1 * jax.random.normal(keys[-1], (1, 1), jnp.float32)
    return params


def _reference_forward(data, params, filter_sizes, n_filters, neg_slope=0.01):
    """Pure-JAX f32 reference for correctness checking."""
    S, B, D = data.shape
    x = jnp.pad(jnp.transpose(data, (1, 0, 2)), ((0, 0), (2, 2), (0, 0)))
    feats = []
    for f in filter_sizes:
        s_out = S + 4 - f + 1
        w = params[f"conv{f}_w"]
        b = params[f"conv{f}_b"][0]
        acc = sum(
            jnp.einsum('bsd,df->bsf', x[:, kh:kh + s_out, :], w[kh],
                       precision=jax.lax.Precision.HIGHEST)
            for kh in range(f)) + b[None, None, :]
        hid = jnp.where(acc > 0, acc, neg_slope * acc)
        feats.append(jnp.max(hid, axis=1))
    feats = jnp.concatenate(feats, axis=1)
    return (jnp.dot(feats, params["proj_w"], precision=jax.lax.Precision.HIGHEST)
            + params["proj_b"][0, 0])[:, 0]


if __name__ == "__main__":
    # Small config: dim=32, filter_sizes=(3,4,5), n_filters=16, seq=8, batch=2.
    dim = 32
    filter_sizes = (3, 4, 5)
    n_filters = 16
    seq_len, batch = 8, 2

    key = jax.random.PRNGKey(0)
    k_data, k_params = jax.random.split(key)
    data = jax.random.normal(k_data, (seq_len, batch, dim), jnp.float32)
    params = init_params(k_params, dim, filter_sizes, n_filters)

    ref = _reference_forward(data, params, filter_sizes, n_filters)

    # f32 kernel run: structural correctness (per-tap matmul, additive masking,
    # bias/LeakyReLU hoisted past the max).
    out_f32 = discriminator_forward(
        data, params, filter_sizes=filter_sizes, n_filters=n_filters,
        compute_dtype=jnp.float32)
    out_f32 = jax.block_until_ready(out_f32)
    assert out_f32.shape == (batch,), out_f32.shape
    assert jnp.allclose(out_f32, ref, atol=1e-3, rtol=1e-3), (out_f32, ref)

    # Default bf16 kernel run: fast path, looser tolerance vs the f32 reference.
    out_bf16 = discriminator_forward(
        data, params, filter_sizes=filter_sizes, n_filters=n_filters)
    out_bf16 = jax.block_until_ready(out_bf16)
    assert out_bf16.shape == (batch,), out_bf16.shape
    assert jnp.allclose(out_bf16, ref, atol=6e-2, rtol=6e-2), (out_bf16, ref)

    # Multi-block grid with a partial (out-of-bounds-read) last tile.
    batch2 = 20
    data2 = jax.random.normal(jax.random.PRNGKey(1), (seq_len, batch2, dim),
                              jnp.float32)
    ref2 = _reference_forward(data2, params, filter_sizes, n_filters)
    out2 = discriminator_forward(
        data2, params, filter_sizes=filter_sizes, n_filters=n_filters,
        compute_dtype=jnp.float32)
    out2 = jax.block_until_ready(out2)
    assert out2.shape == (batch2,), out2.shape
    assert jnp.allclose(out2, ref2, atol=1e-3, rtol=1e-3), (out2, ref2)

    print("KERNEL_OK")
</pallas_src>

<mosaic_0001>
module attributes {stable_mosaic.version = 11 : i64} {
  func.func @kernel(%arg0: i32, %arg1: memref<8x8x32xf32, #tpu.memory_space<vmem>>, %arg2: memref<5x32x48xf32, #tpu.memory_space<vmem>>, %arg3: memref<1x48xf32, #tpu.memory_space<vmem>>, %arg4: memref<10x1x48xf32, #tpu.memory_space<vmem>>, %arg5: memref<1x48xf32, #tpu.memory_space<vmem>>, %arg6: memref<1x1xf32, #tpu.memory_space<smem>>, %arg7: memref<8x1xf32, #tpu.memory_space<vmem>>, %arg8: memref<14x8x32xf32, #tpu.memory_space<vmem>>) attributes {dimension_semantics = [#tpu.dimension_semantics<parallel>], iteration_bounds = array<i64: 1>, scalar_prefetch = 0 : i64, scratch_operands = 1 : i64, tpu.core_type = #tpu.core_type<tc>, window_params = [{transform_indices = @transform_0, window_bounds = array<i64: 8, 8, 32>}, {pipeline_mode = #tpu.pipeline_mode<synchronous>, transform_indices = @transform_1, window_bounds = array<i64: 5, 32, 48>}, {pipeline_mode = #tpu.pipeline_mode<synchronous>, transform_indices = @transform_2, window_bounds = array<i64: 1, 48>}, {pipeline_mode = #tpu.pipeline_mode<synchronous>, transform_indices = @transform_3, window_bounds = array<i64: 10, 1, 48>}, {pipeline_mode = #tpu.pipeline_mode<synchronous>, transform_indices = @transform_4, window_bounds = array<i64: 1, 48>}, {transform_indices = @transform_5, window_bounds = array<i64: 1, 1>}, {transform_indices = @transform_6, window_bounds = array<i64: 8, 1>}]} {
    %cst = arith.constant 0.000000e+00 : f32
    %0 = vector.broadcast %cst : f32 to vector<2x8x32xf32>
    %c0 = arith.constant 0 : index
    %c0_0 = arith.constant 0 : index
    %c0_1 = arith.constant 0 : index
    %1 = vector.load %arg8[%c0, %c0_0, %c0_1] : memref<14x8x32xf32, #tpu.memory_space<vmem>>, vector<2x8x32xf32>
    tpu.vector_store %arg8[%c0, %c0_0, %c0_1], %0 {strides = array<i32>} : memref<14x8x32xf32, #tpu.memory_space<vmem>>, vector<2x8x32xf32>,
    %cst_2 = arith.constant 0.000000e+00 : f32
    %2 = vector.broadcast %cst_2 : f32 to vector<4x8x32xf32>
    %c10 = arith.constant 10 : index
    %c0_3 = arith.constant 0 : index
    %c0_4 = arith.constant 0 : index
    %3 = vector.load %arg8[%c10, %c0_3, %c0_4] : memref<14x8x32xf32, #tpu.memory_space<vmem>>, vector<4x8x32xf32>
    tpu.vector_store %arg8[%c10, %c0_3, %c0_4], %2 {strides = array<i32>} : memref<14x8x32xf32, #tpu.memory_space<vmem>>, vector<4x8x32xf32>,
    %c0_5 = arith.constant 0 : index
    %c0_6 = arith.constant 0 : index
    %c0_7 = arith.constant 0 : index
    %4 = vector.load %arg1[%c0_5, %c0_6, %c0_7] : memref<8x8x32xf32, #tpu.memory_space<vmem>>, vector<8x8x32xf32>
    %c2 = arith.constant 2 : index
    %c0_8 = arith.constant 0 : index
    %c0_9 = arith.constant 0 : index
    %5 = vector.load %arg8[%c2, %c0_8, %c0_9] : memref<14x8x32xf32, #tpu.memory_space<vmem>>, vector<8x8x32xf32>
    tpu.vector_store %arg8[%c2, %c0_8, %c0_9], %4 {strides = array<i32>} : memref<14x8x32xf32, #tpu.memory_space<vmem>>, vector<8x8x32xf32>,
    %c0_10 = arith.constant 0 : index
    %c0_11 = arith.constant 0 : index
    %c0_12 = arith.constant 0 : index
    %6 = vector.load %arg8[%c0_10, %c0_11, %c0_12] : memref<14x8x32xf32, #tpu.memory_space<vmem>>, vector<10x8x32xf32>
    %7 = vector.shape_cast %6 : vector<10x8x32xf32> to vector<80x32xf32>
    %c0_13 = arith.constant 0 : index
    %c0_14 = arith.constant 0 : index
    %c0_15 = arith.constant 0 : index
    %8 = vector.load %arg2[%c0_13, %c0_14, %c0_15] : memref<5x32x48xf32, #tpu.memory_space<vmem>>, vector<1x32x48xf32>
    %9 = vector.shape_cast %8 : vector<1x32x48xf32> to vector<32x48xf32>
    %cst_16 = arith.constant dense<0.000000e+00> : vector<80x48xf32>
    %10 = tpu.matmul %7, %9, %cst_16 {dimension_numbers = #tpu.dot_dimension_numbers<[1], [0], [0], [1], [0, 0, 1, 1], [], []>} : vector<80x32xf32>, vector<32x48xf32>, vector<80x48xf32> -> vector<80x48xf32>
    %c1 = arith.constant 1 : index
    %c0_17 = arith.constant 0 : index
    %c0_18 = arith.constant 0 : index
    %11 = vector.load %arg8[%c1, %c0_17, %c0_18] : memref<14x8x32xf32, #tpu.memory_space<vmem>>, vector<10x8x32xf32>
    %12 = vector.shape_cast %11 : vector<10x8x32xf32> to vector<80x32xf32>
    %c1_19 = arith.constant 1 : index
    %c0_20 = arith.constant 0 : index
    %c0_21 = arith.constant 0 : index
    %13 = vector.load %arg2[%c1_19, %c0_20, %c0_21] : memref<5x32x48xf32, #tpu.memory_space<vmem>>, vector<1x32x48xf32>
    %14 = vector.shape_cast %13 : vector<1x32x48xf32> to vector<32x48xf32>
    %cst_22 = arith.constant dense<0.000000e+00> : vector<80x48xf32>
    %15 = tpu.matmul %12, %14, %cst_22 {dimension_numbers = #tpu.dot_dimension_numbers<[1], [0], [0], [1], [0, 0, 1, 1], [], []>} : vector<80x32xf32>, vector<32x48xf32>, vector<80x48xf32> -> vector<80x48xf32>
    %16 = arith.addf %10, %15 : vector<80x48xf32>
    %c2_23 = arith.constant 2 : index
    %c0_24 = arith.constant 0 : index
    %c0_25 = arith.constant 0 : index
    %17 = vector.load %arg8[%c2_23, %c0_24, %c0_25] : memref<14x8x32xf32, #tpu.memory_space<vmem>>, vector<10x8x32xf32>
    %18 = vector.shape_cast %17 : vector<10x8x32xf32> to vector<80x32xf32>
    %c2_26 = arith.constant 2 : index
    %c0_27 = arith.constant 0 : index
    %c0_28 = arith.constant 0 : index
    %19 = vector.load %arg2[%c2_26, %c0_27, %c0_28] : memref<5x32x48xf32, #tpu.memory_space<vmem>>, vector<1x32x48xf32>
    %20 = vector.shape_cast %19 : vector<1x32x48xf32> to vector<32x48xf32>
    %cst_29 = arith.constant dense<0.000000e+00> : vector<80x48xf32>
    %21 = tpu.matmul %18, %20, %cst_29 {dimension_numbers = #tpu.dot_dimension_numbers<[1], [0], [0], [1], [0, 0, 1, 1], [], []>} : vector<80x32xf32>, vector<32x48xf32>, vector<80x48xf32> -> vector<80x48xf32>
    %22 = arith.addf %16, %21 : vector<80x48xf32>
    %c3 = arith.constant 3 : index
    %c0_30 = arith.constant 0 : index
    %c0_31 = arith.constant 0 : index
    %23 = vector.load %arg8[%c3, %c0_30, %c0_31] : memref<14x8x32xf32, #tpu.memory_space<vmem>>, vector<10x8x32xf32>
    %24 = vector.shape_cast %23 : vector<10x8x32xf32> to vector<80x32xf32>
    %c3_32 = arith.constant 3 : index
    %c0_33 = arith.constant 0 : index
    %c0_34 = arith.constant 0 : index
    %25 = vector.load %arg2[%c3_32, %c0_33, %c0_34] : memref<5x32x48xf32, #tpu.memory_space<vmem>>, vector<1x32x48xf32>
    %26 = vector.shape_cast %25 : vector<1x32x48xf32> to vector<32x48xf32>
    %cst_35 = arith.constant dense<0.000000e+00> : vector<80x48xf32>
    %27 = tpu.matmul %24, %26, %cst_35 {dimension_numbers = #tpu.dot_dimension_numbers<[1], [0], [0], [1], [0, 0, 1, 1], [], []>} : vector<80x32xf32>, vector<32x48xf32>, vector<80x48xf32> -> vector<80x48xf32>
    %28 = arith.addf %22, %27 : vector<80x48xf32>
    %c4 = arith.constant 4 : index
    %c0_36 = arith.constant 0 : index
    %c0_37 = arith.constant 0 : index
    %29 = vector.load %arg8[%c4, %c0_36, %c0_37] : memref<14x8x32xf32, #tpu.memory_space<vmem>>, vector<10x8x32xf32>
    %30 = vector.shape_cast %29 : vector<10x8x32xf32> to vector<80x32xf32>
    %c4_38 = arith.constant 4 : index
    %c0_39 = arith.constant 0 : index
    %c0_40 = arith.constant 0 : index
    %31 = vector.load %arg2[%c4_38, %c0_39, %c0_40] : memref<5x32x48xf32, #tpu.memory_space<vmem>>, vector<1x32x48xf32>
    %32 = vector.shape_cast %31 : vector<1x32x48xf32> to vector<32x48xf32>
    %cst_41 = arith.constant dense<0.000000e+00> : vector<80x48xf32>
    %33 = tpu.matmul %30, %32, %cst_41 {dimension_numbers = #tpu.dot_dimension_numbers<[1], [0], [0], [1], [0, 0, 1, 1], [], []>} : vector<80x32xf32>, vector<32x48xf32>, vector<80x48xf32> -> vector<80x48xf32>
    %34 = arith.addf %28, %33 : vector<80x48xf32>
    %35 = vector.shape_cast %34 : vector<80x48xf32> to vector<10x8x48xf32>
    %c0_42 = arith.constant 0 : index
    %c0_43 = arith.constant 0 : index
    %c0_44 = arith.constant 0 : index
    %36 = vector.load %arg4[%c0_42, %c0_43, %c0_44] : memref<10x1x48xf32, #tpu.memory_space<vmem>>, vector<10x1x48xf32>
    %37 = vector.broadcast %36 : vector<10x1x48xf32> to vector<10x8x48xf32>
    %38 = arith.addf %35, %37 : vector<10x8x48xf32>
    %cst_45 = arith.constant dense<0xFF800000> : vector<8x48xf32>
    %39 = vector.multi_reduction <maximumf>, %38, %cst_45 [0] : vector<10x8x48xf32> to vector<8x48xf32>
    %c0_46 = arith.constant 0 : index
    %c0_47 = arith.constant 0 : index
    %40 = vector.load %arg3[%c0_46, %c0_47] : memref<1x48xf32, #tpu.memory_space<vmem>>, vector<1x48xf32>
    %41 = vector.broadcast %40 : vector<1x48xf32> to vector<8x48xf32>
    %42 = arith.addf %39, %41 : vector<8x48xf32>
    %cst_48 = arith.constant 0.000000e+00 : f32
    %43 = vector.broadcast %cst_48 : f32 to vector<8x48xf32>
    %44 = arith.cmpf ogt, %42, %43 : vector<8x48xf32>
    %cst_49 = arith.constant 0.00999999977 : f32
    %45 = vector.broadcast %cst_49 : f32 to vector<8x48xf32>
    %46 = arith.mulf %45, %42 : vector<8x48xf32>
    %47 = arith.select %44, %42, %46 : vector<8x48xi1>, vector<8x48xf32>
    %c0_50 = arith.constant 0 : index
    %c0_51 = arith.constant 0 : index
    %48 = vector.load %arg5[%c0_50, %c0_51] : memref<1x48xf32, #tpu.memory_space<vmem>>, vector<1x48xf32>
    %49 = vector.broadcast %48 : vector<1x48xf32> to vector<8x48xf32>
    %50 = arith.mulf %47, %49 : vector<8x48xf32>
    %cst_52 = arith.constant dense<0.000000e+00> : vector<8xf32>
    %51 = vector.multi_reduction <add>, %50, %cst_52 [1] : vector<8x48xf32> to vector<8xf32>
    %52 = vector.shape_cast %51 : vector<8xf32> to vector<8x1xf32>
    %c0_53 = arith.constant 0 : index
    %c0_54 = arith.constant 0 : index
    %53 = memref.load %arg6[%c0_53, %c0_54] : memref<1x1xf32, #tpu.memory_space<smem>>
    %54 = vector.broadcast %53 : f32 to vector<8x1xf32>
    %55 = arith.addf %52, %54 : vector<8x1xf32>
    %c0_55 = arith.constant 0 : index
    %c0_56 = arith.constant 0 : index
    %56 = vector.load %arg7[%c0_55, %c0_56] : memref<8x1xf32, #tpu.memory_space<vmem>>, vector<8x1xf32>
    tpu.vector_store %arg7[%c0_55, %c0_56], %55 {strides = array<i32>} : memref<8x1xf32, #tpu.memory_space<vmem>>, vector<8x1xf32>,
    return
  }
  func.func @transform_0(%arg0: i32) -> (i32, i32, i32) {
    %c0_i32 = arith.constant 0 : i32
    %c0_i32_0 = arith.constant 0 : i32
    %c0_i32_1 = arith.constant 0 : i32
    return %c0_i32, %arg0, %c0_i32_0 : i32, i32, i32
  }
  func.func @transform_1(%arg0: i32) -> (i32, i32, i32) {
    %c0_i32 = arith.constant 0 : i32
    %c0_i32_0 = arith.constant 0 : i32
    %c0_i32_1 = arith.constant 0 : i32
    %c0_i32_2 = arith.constant 0 : i32
    return %c0_i32, %c0_i32_0, %c0_i32_1 : i32, i32, i32
  }
  func.func @transform_2(%arg0: i32) -> (i32, i32) {
    %c0_i32 = arith.constant 0 : i32
    %c0_i32_0 = arith.constant 0 : i32
    %c0_i32_1 = arith.constant 0 : i32
    return %c0_i32, %c0_i32_0 : i32, i32
  }
  func.func @transform_3(%arg0: i32) -> (i32, i32, i32) {
    %c0_i32 = arith.constant 0 : i32
    %c0_i32_0 = arith.constant 0 : i32
    %c0_i32_1 = arith.constant 0 : i32
    %c0_i32_2 = arith.constant 0 : i32
    return %c0_i32, %c0_i32_0, %c0_i32_1 : i32, i32, i32
  }
  func.func @transform_4(%arg0: i32) -> (i32, i32) {
    %c0_i32 = arith.constant 0 : i32
    %c0_i32_0 = arith.constant 0 : i32
    %c0_i32_1 = arith.constant 0 : i32
    return %c0_i32, %c0_i32_0 : i32, i32
  }
  func.func @transform_5(%arg0: i32) -> (i32, i32) {
    %c0_i32 = arith.constant 0 : i32
    %c0_i32_0 = arith.constant 0 : i32
    %c0_i32_1 = arith.constant 0 : i32
    return %c0_i32, %c0_i32_0 : i32, i32
  }
  func.func @transform_6(%arg0: i32) -> (i32, i32) {
    %c0_i32 = arith.constant 0 : i32
    %c0_i32_0 = arith.constant 0 : i32
    return %arg0, %c0_i32 : i32, i32
  }
}

</mosaic_0001>

<llo_original>
// kernel: discriminator_forward.1
$region0: #{discriminator_forward.1}
  #allocation0 [shape = 'u32[]', space=smem, size = 0x4, offset = 0x4, fixed_abs, tag = 'smem constant byte address 0x4 - core index']
  #allocation1 [shape = 'u32[144,128]{1,0:T(1,128)}', space=vmem, size = 0x12000, scoped, tag = 'internal scratch']
  #allocation2 [shape = 'f32[14,8,32]{2,1,0:T(8,128)}', space=vmem, size = 0xe000, scoped, tag = 'scratch operand']
  #allocation3 [shape = 'f32[1,1]{1,0:T(1,128)S(6)}', space=smem, size = 0x200, scoped, tag = 'scoped memory for discriminator_forward.1']
  %s0 = inlined_call_operand.vmem [shape: f32[8,8,32], index: 0, kind: input, shape index: {}]
  %s1 = inlined_call_operand.vmem [shape: f32[5,32,48], index: 1, kind: input, shape index: {}]
  %s2 = inlined_call_operand.vmem [shape: f32[1,48], index: 2, kind: input, shape index: {}]
  %s3 = inlined_call_operand.vmem [shape: f32[10,1,48], index: 3, kind: input, shape index: {}]
  %s4 = inlined_call_operand.vmem [shape: f32[1,48], index: 4, kind: input, shape index: {}]
  %s5 = inlined_call_operand.<no memory space> [shape: f32[1,1], index: 5, kind: input, shape index: {}]
  %s6 = inlined_call_operand.vmem [shape: f32[8,1], index: 6, kind: output, shape index: {}]
  %s7 = sld [smem:[#allocation0]]
  $region34: #{discriminator_forward.1} parent=0
    _
  %s9 = ssub.s32 1, %s7
  %s10 = scalar_select 0, %s9, %s7
  %11 = sst [smem:[#allocation3]] %s5
  // Predicated region
  $region2: #{discriminator_forward.1} parent=0 // pred_check
    _
  $region3: #{discriminator_forward.1} parent=0 // pred_check_branch
    %13 = sbr.rel (0) target = $region5
  $region4: #{discriminator_forward.1} parent=0 // pred_region
    _
  $region5: #{discriminator_forward.1} parent=0 // pred_fallthru
    _
  // Predicated region
  $region6: #{discriminator_forward.1} parent=0 // pred_check
    _
  $region7: #{discriminator_forward.1} parent=0 // pred_check_branch
    %15 = sbr.rel (0) target = $region9
  $region8: #{discriminator_forward.1} parent=0 // pred_region
    _
  $region9: #{discriminator_forward.1} parent=0 // pred_fallthru
    _
  // Predicated region
  $region10: #{discriminator_forward.1} parent=0 // pred_check
    _
  $region11: #{discriminator_forward.1} parent=0 // pred_check_branch
    %17 = sbr.rel (0) target = $region13
  $region12: #{discriminator_forward.1} parent=0 // pred_region
    _
  $region13: #{discriminator_forward.1} parent=0 // pred_fallthru
    _
  // Predicated region
  $region14: #{discriminator_forward.1} parent=0 // pred_check
    _
  $region15: #{discriminator_forward.1} parent=0 // pred_check_branch
    %19 = sbr.rel (0) target = $region17
  $region16: #{discriminator_forward.1} parent=0 // pred_region
    _
  $region17: #{discriminator_forward.1} parent=0 // pred_fallthru
    _
  // Predicated region
  $region18: #{discriminator_forward.1} parent=0 // pred_check
    _
  $region19: #{discriminator_forward.1} parent=0 // pred_check_branch
    %21 = sbr.rel (0) target = $region21
  $region20: #{discriminator_forward.1} parent=0 // pred_region
    _
  $region21: #{discriminator_forward.1} parent=0 // pred_fallthru
    _
  // Predicated region
  $region22: #{discriminator_forward.1} parent=0 // pred_check
    _
  $region23: #{discriminator_forward.1} parent=0 // pred_check_branch
    %23 = sbr.rel (0) target = $region25
  $region24: #{discriminator_forward.1} parent=0 // pred_region
    _
  $region25: #{discriminator_forward.1} parent=0 // pred_fallthru
    _
  %vm24 = vcmask 261120
  %25 = vst.msk [vmem:[#allocation2] sm:$0xff] %vm24, 0.0
  %26 = vst.msk [vmem:[#allocation2 + $0x8] sm:$0xff] %vm24, 0.0
  %s27 = scalar_lea.vmem [#allocation2], 80
  %28 = vst.msk [vmem:[%s27] sm:$0xff] %vm24, 0.0
  %29 = vst.msk [vmem:[%s27 + $0x8] sm:$0xff] %vm24, 0.0
  %30 = vst.msk [vmem:[%s27 + $0x10] sm:$0xff] %vm24, 0.0
  %31 = vst.msk [vmem:[%s27 + $0x18] sm:$0xff] %vm24, 0.0
  %v32 = vld [vmem:[%s0] sm:$0xff]
  %v33 = vld [vmem:[%s0 + $0x8] sm:$0xff]
  %v34 = vld [vmem:[%s0 + $0x10] sm:$0xff]
  %v35 = vld [vmem:[%s0 + $0x18] sm:$0xff]
  %v36 = vld [vmem:[%s0 + $0x20] sm:$0xff]
  %v37 = vld [vmem:[%s0 + $0x28] sm:$0xff]
  %v38 = vld [vmem:[%s0 + $0x30] sm:$0xff]
  %v39 = vld [vmem:[%s0 + $0x38] sm:$0xff]
  %s40 = scalar_lea.vmem [#allocation2], 16
  %41 = vst.msk [vmem:[%s40] sm:$0xff] %vm24, %v32
  %42 = vst.msk [vmem:[%s40 + $0x8] sm:$0xff] %vm24, %v33
  %43 = vst.msk [vmem:[%s40 + $0x10] sm:$0xff] %vm24, %v34
  %44 = vst.msk [vmem:[%s40 + $0x18] sm:$0xff] %vm24, %v35
  %45 = vst.msk [vmem:[%s40 + $0x20] sm:$0xff] %vm24, %v36
  %46 = vst.msk [vmem:[%s40 + $0x28] sm:$0xff] %vm24, %v37
  %47 = vst.msk [vmem:[%s40 + $0x30] sm:$0xff] %vm24, %v38
  %48 = vst.msk [vmem:[%s40 + $0x38] sm:$0xff] %vm24, %v39
  %v49 = vld [vmem:[#allocation2] sm:$0xff]
  %v50 = vld [vmem:[#allocation2 + $0x8] sm:$0xff]
  %v51 = vld [vmem:[#allocation2 + $0x10] sm:$0xff]
  %v52 = vld [vmem:[#allocation2 + $0x18] sm:$0xff]
  %v53 = vld [vmem:[#allocation2 + $0x20] sm:$0xff]
  %v54 = vld [vmem:[#allocation2 + $0x28] sm:$0xff]
  %v55 = vld [vmem:[#allocation2 + $0x30] sm:$0xff]
  %v56 = vld [vmem:[#allocation2 + $0x38] sm:$0xff]
  %v57 = vld [vmem:[#allocation2 + $0x40] sm:$0xff]
  %v58 = vld [vmem:[#allocation2 + $0x48] sm:$0xff]
  %v59 = vld [vmem:[%s1] sm:$0xff]
  %v60 = vld [vmem:[%s1 + $0x8] sm:$0xff]
  %v61 = vld [vmem:[%s1 + $0x10] sm:$0xff]
  %v62 = vld [vmem:[%s1 + $0x18] sm:$0xff]
  %s63 = scalar_lea.vmem [#allocation2], 8
  %v64 = vld [vmem:[%s63] sm:$0xff]
  %v65 = vld [vmem:[%s63 + $0x8] sm:$0xff]
  %v66 = vld [vmem:[%s63 + $0x10] sm:$0xff]
  %v67 = vld [vmem:[%s63 + $0x18] sm:$0xff]
  %v68 = vld [vmem:[%s63 + $0x20] sm:$0xff]
  %v69 = vld [vmem:[%s63 + $0x28] sm:$0xff]
  %v70 = vld [vmem:[%s63 + $0x30] sm:$0xff]
  %v71 = vld [vmem:[%s63 + $0x38] sm:$0xff]
  %v72 = vld [vmem:[%s63 + $0x40] sm:$0xff]
  %v73 = vld [vmem:[%s63 + $0x48] sm:$0xff]
  %s74 = scalar_lea.vmem %s1, 32
  %v75 = vld [vmem:[%s74] sm:$0xff]
  %v76 = vld [vmem:[%s74 + $0x8] sm:$0xff]
  %v77 = vld [vmem:[%s74 + $0x10] sm:$0xff]
  %v78 = vld [vmem:[%s74 + $0x18] sm:$0xff]
  %v80 = vsel %vm24, %v64, 0
  %v83 = vsel %vm24, %v65, 0
  %v86 = vsel %vm24, %v66, 0
  %v89 = vsel %vm24, %v67, 0
  %v92 = vsel %vm24, %v68, 0
  %v95 = vsel %vm24, %v69, 0
  %v98 = vsel %vm24, %v70, 0
  %v101 = vsel %vm24, %v71, 0
  %v104 = vsel %vm24, %v72, 0
  %v107 = vsel %vm24, %v73, 0
  %109 = vmatprep.subr.mxu0 0.0
  %110 = vmatpush1.msra.mxu0 %v75
  %111 = vmatprep.subr.mxu0 0.0
  %112 = vmatpush1.msra.mxu0 %v76
  %113 = vmatprep.subr.mxu0 0.0
  %114 = vmatpush1.msra.mxu0 %v77
  %115 = vmatprep.subr.mxu0 0.0
  %116 = vmatpush1.msra.mxu0 %v78
  %117 = vmatprep.subr.mxu0 0.0
  %118 = vmatpush1.msra.mxu0 0.0
  %119 = vmatprep.subr.mxu0 0.0
  %120 = vmatpush1.msra.mxu0 0.0
  %121 = vmatprep.subr.mxu0 0.0
  %122 = vmatpush1.msra.mxu0 0.0
  %123 = vmatprep.subr.mxu0 0.0
  %124 = vmatpush1.msra.mxu0 0.0
  %125 = vmatprep.subr.mxu0 0.0
  %126 = vmatpush1.msra.mxu0 0.0
  %127 = vmatprep.subr.mxu0 0.0
  %128 = vmatpush1.msra.mxu0 0.0
  %129 = vmatprep.subr.mxu0 0.0
  %130 = vmatpush1.msra.mxu0 0.0
  %131 = vmatprep.subr.mxu0 0.0
  %132 = vmatpush1.msra.mxu0 0.0
  %133 = vmatprep.subr.mxu0 0.0
  %134 = vmatpush1.msra.mxu0 0.0
  %135 = vmatprep.subr.mxu0 0.0
  %136 = vmatpush1.msra.mxu0 0.0
  %137 = vmatprep.subr.mxu0 0.0
  %138 = vmatpush1.msra.mxu0 0.0
  %139 = vmatprep.subr.mxu0 0.0
  %140 = vmatpush1.msra.mxu0 0.0
  %141 = vmatprep.subr.mxu0 0.0
  %142 = vmatpush1.msra.mxu0 0.0
  %143 = vmatprep.subr.mxu0 0.0
  %144 = vmatpush1.msra.mxu0 0.0
  %145 = vmatprep.subr.mxu0 0.0
  %146 = vmatpush1.msra.mxu0 0.0
  %147 = vmatprep.subr.mxu0 0.0
  %148 = vmatpush1.msra.mxu0 0.0
  %149 = vmatprep.subr.mxu0 0.0
  %150 = vmatpush1.msra.mxu0 0.0
  %151 = vmatprep.subr.mxu0 0.0
  %152 = vmatpush1.msra.mxu0 0.0
  %153 = vmatprep.subr.mxu0 0.0
  %154 = vmatpush1.msra.mxu0 0.0
  %155 = vmatprep.subr.mxu0 0.0
  %156 = vmatpush1.msra.mxu0 0.0
  %157 = vmatprep.subr.mxu0 0.0
  %158 = vmatpush1.msra.mxu0 0.0
  %159 = vmatprep.subr.mxu0 0.0
  %160 = vmatpush1.msra.mxu0 0.0
  %161 = vmatprep.subr.mxu0 0.0
  %162 = vmatpush1.msra.mxu0 0.0
  %163 = vmatprep.subr.mxu0 0.0
  %164 = vmatpush1.msra.mxu0 0.0
  %165 = vmatprep.subr.mxu0 0.0
  %166 = vmatpush1.msra.mxu0 0.0
  %167 = vmatprep.subr.mxu0 0.0
  %168 = vmatpush1.msra.mxu0 0.0
  %169 = vmatprep.subr.mxu0 0.0
  %170 = vmatpush1.msra.mxu0 0.0
  %171 = vmatprep.subr.mxu0 0.0
  %172 = vmatpush1.msra.mxu0 0.0
  %173 = vmatprep.mubr.f32.mxu0 0.0
  %174 = vmatmul.mubr.f32.gmra.mrb[0].mxu0 %v80
  %v175 = vpop.f32.mrb[0].mxu0
  %v176 = vadd.f32 0.0, %v175
  %v177 = vpop.f32.mrb[0].mxu0
  %178 = vmatprep.mubr.f32.mxu0 0.0
  %179 = vmatmul.mubr.f32.gmra.mrb[0].mxu0 %v83
  %v180 = vpop.f32.mrb[0].mxu0
  %v181 = vadd.f32 0.0, %v180
  %v182 = vpop.f32.mrb[0].mxu0
  %183 = vmatprep.mubr.f32.mxu0 0.0
  %184 = vmatmul.mubr.f32.gmra.mrb[0].mxu0 %v86
  %v185 = vpop.f32.mrb[0].mxu0
  %v186 = vadd.f32 0.0, %v185
  %v187 = vpop.f32.mrb[0].mxu0
  %188 = vmatprep.mubr.f32.mxu0 0.0
  %189 = vmatmul.mubr.f32.gmra.mrb[0].mxu0 %v89
  %v190 = vpop.f32.mrb[0].mxu0
  %v191 = vadd.f32 0.0, %v190
  %v192 = vpop.f32.mrb[0].mxu0
  %193 = vmatprep.mubr.f32.mxu0 0.0
  %194 = vmatmul.mubr.f32.gmra.mrb[0].mxu0 %v92
  %v195 = vpop.f32.mrb[0].mxu0
  %v196 = vadd.f32 0.0, %v195
  %v197 = vpop.f32.mrb[0].mxu0
  %198 = vmatprep.mubr.f32.mxu0 0.0
  %199 = vmatmul.mubr.f32.gmra.mrb[0].mxu0 %v95
  %v200 = vpop.f32.mrb[0].mxu0
  %v201 = vadd.f32 0.0, %v200
  %v202 = vpop.f32.mrb[0].mxu0
  %203 = vmatprep.mubr.f32.mxu0 0.0
  %204 = vmatmul.mubr.f32.gmra.mrb[0].mxu0 %v98
  %v205 = vpop.f32.mrb[0].mxu0
  %v206 = vadd.f32 0.0, %v205
  %v207 = vpop.f32.mrb[0].mxu0
  %208 = vmatprep.mubr.f32.mxu0 0.0
  %209 = vmatmul.mubr.f32.gmra.mrb[0].mxu0 %v101
  %v210 = vpop.f32.mrb[0].mxu0
  %v211 = vadd.f32 0.0, %v210
  %v212 = vpop.f32.mrb[0].mxu0
  %213 = vmatprep.mubr.f32.mxu0 0.0
  %214 = vmatmul.mubr.f32.gmra.mrb[0].mxu0 %v104
  %v215 = vpop.f32.mrb[0].mxu0
  %v216 = vadd.f32 0.0, %v215
  %v217 = vpop.f32.mrb[0].mxu0
  %218 = vmatprep.mubr.f32.mxu0 0.0
  %219 = vmatmul.mubr.f32.gmra.mrb[0].mxu0 %v107
  %v220 = vpop.f32.mrb[0].mxu0
  %v221 = vadd.f32 0.0, %v220
  %v222 = vpop.f32.mrb[0].mxu0
  %223 = vdwg.mxu0
  %v225 = vsel %vm24, %v49, 0
  %v228 = vsel %vm24, %v50, 0
  %v231 = vsel %vm24, %v51, 0
  %v234 = vsel %vm24, %v52, 0
  %v237 = vsel %vm24, %v53, 0
  %v240 = vsel %vm24, %v54, 0
  %v243 = vsel %vm24, %v55, 0
  %v246 = vsel %vm24, %v56, 0
  %v249 = vsel %vm24, %v57, 0
  %v252 = vsel %vm24, %v58, 0
  %254 = vmatprep.subr.mxu0 0.0
  %255 = vmatpush1.msra.mxu0 %v59
  %256 = vmatprep.subr.mxu0 0.0
  %257 = vmatpush1.msra.mxu0 %v60
  %258 = vmatprep.subr.mxu0 0.0
  %259 = vmatpush1.msra.mxu0 %v61
  %260 = vmatprep.subr.mxu0 0.0
  %261 = vmatpush1.msra.mxu0 %v62
  %262 = vmatprep.subr.mxu0 0.0
  %263 = vmatpush1.msra.mxu0 0.0
  %264 = vmatprep.subr.mxu0 0.0
  %265 = vmatpush1.msra.mxu0 0.0
  %266 = vmatprep.subr.mxu0 0.0
  %267 = vmatpush1.msra.mxu0 0.0
  %268 = vmatprep.subr.mxu0 0.0
  %269 = vmatpush1.msra.mxu0 0.0
  %270 = vmatprep.subr.mxu0 0.0
  %271 = vmatpush1.msra.mxu0 0.0
  %272 = vmatprep.subr.mxu0 0.0
  %273 = vmatpush1.msra.mxu0 0.0
  %274 = vmatprep.subr.mxu0 0.0
  %275 = vmatpush1.msra.mxu0 0.0
  %276 = vmatprep.subr.mxu0 0.0
  %277 = vmatpush1.msra.mxu0 0.0
  %278 = vmatprep.subr.mxu0 0.0
  %279 = vmatpush1.msra.mxu0 0.0
  %280 = vmatprep.subr.mxu0 0.0
  %281 = vmatpush1.msra.mxu0 0.0
  %282 = vmatprep.subr.mxu0 0.0
  %283 = vmatpush1.msra.mxu0 0.0
  %284 = vmatprep.subr.mxu0 0.0
  %285 = vmatpush1.msra.mxu0 0.0
  %286 = vmatprep.subr.mxu0 0.0
  %287 = vmatpush1.msra.mxu0 0.0
  %288 = vmatprep.subr.mxu0 0.0
  %289 = vmatpush1.msra.mxu0 0.0
  %290 = vmatprep.subr.mxu0 0.0
  %291 = vmatpush1.msra.mxu0 0.0
  %292 = vmatprep.subr.mxu0 0.0
  %293 = vmatpush1.msra.mxu0 0.0
  %294 = vmatprep.subr.mxu0 0.0
  %295 = vmatpush1.msra.mxu0 0.0
  %296 = vmatprep.subr.mxu0 0.0
  %297 = vmatpush1.msra.mxu0 0.0
  %298 = vmatprep.subr.mxu0 0.0
  %299 = vmatpush1.msra.mxu0 0.0
  %300 = vmatprep.subr.mxu0 0.0
  %301 = vmatpush1.msra.mxu0 0.0
  %302 = vmatprep.subr.mxu0 0.0
  %303 = vmatpush1.msra.mxu0 0.0
  %304 = vmatprep.subr.mxu0 0.0
  %305 = vmatpush1.msra.mxu0 0.0
  %306 = vmatprep.subr.mxu0 0.0
  %307 = vmatpush1.msra.mxu0 0.0
  %308 = vmatprep.subr.mxu0 0.0
  %309 = vmatpush1.msra.mxu0 0.0
  %310 = vmatprep.subr.mxu0 0.0
  %311 = vmatpush1.msra.mxu0 0.0
  %312 = vmatprep.subr.mxu0 0.0
  %313 = vmatpush1.msra.mxu0 0.0
  %314 = vmatprep.subr.mxu0 0.0
  %315 = vmatpush1.msra.mxu0 0.0
  %316 = vmatprep.subr.mxu0 0.0
  %317 = vmatpush1.msra.mxu0 0.0
  %318 = vmatprep.mubr.f32.mxu0 0.0
  %319 = vmatmul.mubr.f32.gmra.mrb[0].mxu0 %v225
  %v320 = vpop.f32.mrb[0].mxu0
  %v321 = vadd.f32 %v176, %v320
  %v322 = vpop.f32.mrb[0].mxu0
  %323 = vmatprep.mubr.f32.mxu0 0.0
  %324 = vmatmul.mubr.f32.gmra.mrb[0].mxu0 %v228
  %v325 = vpop.f32.mrb[0].mxu0
  %v326 = vadd.f32 %v181, %v325
  %v327 = vpop.f32.mrb[0].mxu0
  %328 = vmatprep.mubr.f32.mxu0 0.0
  %329 = vmatmul.mubr.f32.gmra.mrb[0].mxu0 %v231
  %v330 = vpop.f32.mrb[0].mxu0
  %v331 = vadd.f32 %v186, %v330
  %v332 = vpop.f32.mrb[0].mxu0
  %333 = vmatprep.mubr.f32.mxu0 0.0
  %334 = vmatmul.mubr.f32.gmra.mrb[0].mxu0 %v234
  %v335 = vpop.f32.mrb[0].mxu0
  %v336 = vadd.f32 %v191, %v335
  %v337 = vpop.f32.mrb[0].mxu0
  %338 = vmatprep.mubr.f32.mxu0 0.0
  %339 = vmatmul.mubr.f32.gmra.mrb[0].mxu0 %v237
  %v340 = vpop.f32.mrb[0].mxu0
  %v341 = vadd.f32 %v196, %v340
  %v342 = vpop.f32.mrb[0].mxu0
  %343 = vmatprep.mubr.f32.mxu0 0.0
  %344 = vmatmul.mubr.f32.gmra.mrb[0].mxu0 %v240
  %v345 = vpop.f32.mrb[0].mxu0
  %v346 = vadd.f32 %v201, %v345
  %v347 = vpop.f32.mrb[0].mxu0
  %348 = vmatprep.mubr.f32.mxu0 0.0
  %349 = vmatmul.mubr.f32.gmra.mrb[0].mxu0 %v243
  %v350 = vpop.f32.mrb[0].mxu0
  %v351 = vadd.f32 %v206, %v350
  %v352 = vpop.f32.mrb[0].mxu0
  %353 = vmatprep.mubr.f32.mxu0 0.0
  %354 = vmatmul.mubr.f32.gmra.mrb[0].mxu0 %v246
  %v355 = vpop.f32.mrb[0].mxu0
  %v356 = vadd.f32 %v211, %v355
  %v357 = vpop.f32.mrb[0].mxu0
  %358 = vmatprep.mubr.f32.mxu0 0.0
  %359 = vmatmul.mubr.f32.gmra.mrb[0].mxu0 %v249
  %v360 = vpop.f32.mrb[0].mxu0
  %v361 = vadd.f32 %v216, %v360
  %v362 = vpop.f32.mrb[0].mxu0
  %363 = vmatprep.mubr.f32.mxu0 0.0
  %364 = vmatmul.mubr.f32.gmra.mrb[0].mxu0 %v252
  %v365 = vpop.f32.mrb[0].mxu0
  %v366 = vadd.f32 %v221, %v365
  %v367 = vpop.f32.mrb[0].mxu0
  %368 = vdwg.mxu0
  %v369 = vld [vmem:[%s40] sm:$0xff]
  %v370 = vld [vmem:[%s40 + $0x8] sm:$0xff]
  %v371 = vld [vmem:[%s40 + $0x10] sm:$0xff]
  %v372 = vld [vmem:[%s40 + $0x18] sm:$0xff]
  %v373 = vld [vmem:[%s40 + $0x20] sm:$0xff]
  %v374 = vld [vmem:[%s40 + $0x28] sm:$0xff]
  %v375 = vld [vmem:[%s40 + $0x30] sm:$0xff]
  %v376 = vld [vmem:[%s40 + $0x38] sm:$0xff]
  %v377 = vld [vmem:[%s40 + $0x40] sm:$0xff]
  %v378 = vld [vmem:[%s40 + $0x48] sm:$0xff]
  %s379 = scalar_lea.vmem %s1, 64
  %v380 = vld [vmem:[%s379] sm:$0xff]
  %v381 = vld [vmem:[%s379 + $0x8] sm:$0xff]
  %v382 = vld [vmem:[%s379 + $0x10] sm:$0xff]
  %v383 = vld [vmem:[%s379 + $0x18] sm:$0xff]
  %v385 = vsel %vm24, %v369, 0
  %v388 = vsel %vm24, %v370, 0
  %v391 = vsel %vm24, %v371, 0
  %v394 = vsel %vm24, %v372, 0
  %v397 = vsel %vm24, %v373, 0
  %v400 = vsel %vm24, %v374, 0
  %v403 = vsel %vm24, %v375, 0
  %v406 = vsel %vm24, %v376, 0
  %v409 = vsel %vm24, %v377, 0
  %v412 = vsel %vm24, %v378, 0
  %414 = vmatprep.subr.mxu0 0.0
  %415 = vmatpush1.msra.mxu0 %v380
  %416 = vmatprep.subr.mxu0 0.0
  %417 = vmatpush1.msra.mxu0 %v381
  %418 = vmatprep.subr.mxu0 0.0
  %419 = vmatpush1.msra.mxu0 %v382
  %420 = vmatprep.subr.mxu0 0.0
  %421 = vmatpush1.msra.mxu0 %v383
  %422 = vmatprep.subr.mxu0 0.0
  %423 = vmatpush1.msra.mxu0 0.0
  %424 = vmatprep.subr.mxu0 0.0
  %425 = vmatpush1.msra.mxu0 0.0
  %426 = vmatprep.subr.mxu0 0.0
  %427 = vmatpush1.msra.mxu0 0.0
  %428 = vmatprep.subr.mxu0 0.0
  %429 = vmatpush1.msra.mxu0 0.0
  %430 = vmatprep.subr.mxu0 0.0
  %431 = vmatpush1.msra.mxu0 0.0
  %432 = vmatprep.subr.mxu0 0.0
  %433 = vmatpush1.msra.mxu0 0.0
  %434 = vmatprep.subr.mxu0 0.0
  %435 = vmatpush1.msra.mxu0 0.0
  %436 = vmatprep.subr.mxu0 0.0
  %437 = vmatpush1.msra.mxu0 0.0
  %438 = vmatprep.subr.mxu0 0.0
  %439 = vmatpush1.msra.mxu0 0.0
  %440 = vmatprep.subr.mxu0 0.0
  %441 = vmatpush1.msra.mxu0 0.0
  %442 = vmatprep.subr.mxu0 0.0
  %443 = vmatpush1.msra.mxu0 0.0
  %444 = vmatprep.subr.mxu0 0.0
  %445 = vmatpush1.msra.mxu0 0.0
  %446 = vmatprep.subr.mxu0 0.0
  %447 = vmatpush1.msra.mxu0 0.0
  %448 = vmatprep.subr.mxu0 0.0
  %449 = vmatpush1.msra.mxu0 0.0
  %450 = vmatprep.subr.mxu0 0.0
  %451 = vmatpush1.msra.mxu0 0.0
  %452 = vmatprep.subr.mxu0 0.0
  %453 = vmatpush1.msra.mxu0 0.0
  %454 = vmatprep.subr.mxu0 0.0
  %455 = vmatpush1.msra.mxu0 0.0
  %456 = vmatprep.subr.mxu0 0.0
  %457 = vmatpush1.msra.mxu0 0.0
  %458 = vmatprep.subr.mxu0 0.0
  %459 = vmatpush1.msra.mxu0 0.0
  %460 = vmatprep.subr.mxu0 0.0
  %461 = vmatpush1.msra.mxu0 0.0
  %462 = vmatprep.subr.mxu0 0.0
  %463 = vmatpush1.msra.mxu0 0.0
  %464 = vmatprep.subr.mxu0 0.0
  %465 = vmatpush1.msra.mxu0 0.0
  %466 = vmatprep.subr.mxu0 0.0
  %467 = vmatpush1.msra.mxu0 0.0
  %468 = vmatprep.subr.mxu0 0.0
  %469 = vmatpush1.msra.mxu0 0.0
  %470 = vmatprep.subr.mxu0 0.0
  %471 = vmatpush1.msra.mxu0 0.0
  %472 = vmatprep.subr.mxu0 0.0
  %473 = vmatpush1.msra.mxu0 0.0
  %474 = vmatprep.subr.mxu0 0.0
  %475 = vmatpush1.msra.mxu0 0.0
  %476 = vmatprep.subr.mxu0 0.0
  %477 = vmatpush1.msra.mxu0 0.0
  %478 = vmatprep.mubr.f32.mxu0 0.0
  %479 = vmatmul.mubr.f32.gmra.mrb[0].mxu0 %v385
  %v480 = vpop.f32.mrb[0].mxu0
  %v481 = vadd.f32 0.0, %v480
  %v482 = vpop.f32.mrb[0].mxu0
  %483 = vmatprep.mubr.f32.mxu0 0.0
  %484 = vmatmul.mubr.f32.gmra.mrb[0].mxu0 %v388
  %v485 = vpop.f32.mrb[0].mxu0
  %v486 = vadd.f32 0.0, %v485
  %v487 = vpop.f32.mrb[0].mxu0
  %488 = vmatprep.mubr.f32.mxu0 0.0
  %489 = vmatmul.mubr.f32.gmra.mrb[0].mxu0 %v391
  %v490 = vpop.f32.mrb[0].mxu0
  %v491 = vadd.f32 0.0, %v490
  %v492 = vpop.f32.mrb[0].mxu0
  %493 = vmatprep.mubr.f32.mxu0 0.0
  %494 = vmatmul.mubr.f32.gmra.mrb[0].mxu0 %v394
  %v495 = vpop.f32.mrb[0].mxu0
  %v496 = vadd.f32 0.0, %v495
  %v497 = vpop.f32.mrb[0].mxu0
  %498 = vmatprep.mubr.f32.mxu0 0.0
  %499 = vmatmul.mubr.f32.gmra.mrb[0].mxu0 %v397
  %v500 = vpop.f32.mrb[0].mxu0
  %v501 = vadd.f32 0.0, %v500
  %v502 = vpop.f32.mrb[0].mxu0
  %503 = vmatprep.mubr.f32.mxu0 0.0
  %504 = vmatmul.mubr.f32.gmra.mrb[0].mxu0 %v400
  %v505 = vpop.f32.mrb[0].mxu0
  %v506 = vadd.f32 0.0, %v505
  %v507 = vpop.f32.mrb[0].mxu0
  %508 = vmatprep.mubr.f32.mxu0 0.0
  %509 = vmatmul.mubr.f32.gmra.mrb[0].mxu0 %v403
  %v510 = vpop.f32.mrb[0].mxu0
  %v511 = vadd.f32 0.0, %v510
  %v512 = vpop.f32.mrb[0].mxu0
  %513 = vmatprep.mubr.f32.mxu0 0.0
  %514 = vmatmul.mubr.f32.gmra.mrb[0].mxu0 %v406
  %v515 = vpop.f32.mrb[0].mxu0
  %v516 = vadd.f32 0.0, %v515
  %v517 = vpop.f32.mrb[0].mxu0
  %518 = vmatprep.mubr.f32.mxu0 0.0
  %519 = vmatmul.mubr.f32.gmra.mrb[0].mxu0 %v409
  %v520 = vpop.f32.mrb[0].mxu0
  %v521 = vadd.f32 0.0, %v520
  %v522 = vpop.f32.mrb[0].mxu0
  %523 = vmatprep.mubr.f32.mxu0 0.0
  %524 = vmatmul.mubr.f32.gmra.mrb[0].mxu0 %v412
  %v525 = vpop.f32.mrb[0].mxu0
  %v526 = vadd.f32 0.0, %v525
  %v527 = vpop.f32.mrb[0].mxu0
  %528 = vdwg.mxu0
  %v529 = vadd.f32 %v321, %v481
  %v530 = vadd.f32 %v326, %v486
  %v531 = vadd.f32 %v331, %v491
  %v532 = vadd.f32 %v336, %v496
  %v533 = vadd.f32 %v341, %v501
  %v534 = vadd.f32 %v346, %v506
  %v535 = vadd.f32 %v351, %v511
  %v536 = vadd.f32 %v356, %v516
  %v537 = vadd.f32 %v361, %v521
  %v538 = vadd.f32 %v366, %v526
  %s539 = scalar_lea.vmem [#allocation2], 24
  %v540 = vld [vmem:[%s539] sm:$0xff]
  %v541 = vld [vmem:[%s539 + $0x8] sm:$0xff]
  %v542 = vld [vmem:[%s539 + $0x10] sm:$0xff]
  %v543 = vld [vmem:[%s539 + $0x18] sm:$0xff]
  %v544 = vld [vmem:[%s539 + $0x20] sm:$0xff]
  %v545 = vld [vmem:[%s539 + $0x28] sm:$0xff]
  %v546 = vld [vmem:[%s539 + $0x30] sm:$0xff]
  %v547 = vld [vmem:[%s539 + $0x38] sm:$0xff]
  %v548 = vld [vmem:[%s539 + $0x40] sm:$0xff]
  %v549 = vld [vmem:[%s539 + $0x48] sm:$0xff]
  %s550 = scalar_lea.vmem %s1, 96
  %v551 = vld [vmem:[%s550] sm:$0xff]
  %v552 = vld [vmem:[%s550 + $0x8] sm:$0xff]
  %v553 = vld [vmem:[%s550 + $0x10] sm:$0xff]
  %v554 = vld [vmem:[%s550 + $0x18] sm:$0xff]
  %v556 = vsel %vm24, %v540, 0
  %v559 = vsel %vm24, %v541, 0
  %v562 = vsel %vm24, %v542, 0
  %v565 = vsel %vm24, %v543, 0
  %v568 = vsel %vm24, %v544, 0
  %v571 = vsel %vm24, %v545, 0
  %v574 = vsel %vm24, %v546, 0
  %v577 = vsel %vm24, %v547, 0
  %v580 = vsel %vm24, %v548, 0
  %v583 = vsel %vm24, %v549, 0
  %585 = vmatprep.subr.mxu0 0.0
  %586 = vmatpush1.msra.mxu0 %v551
  %587 = vmatprep.subr.mxu0 0.0
  %588 = vmatpush1.msra.mxu0 %v552
  %589 = vmatprep.subr.mxu0 0.0
  %590 = vmatpush1.msra.mxu0 %v553
  %591 = vmatprep.subr.mxu0 0.0
  %592 = vmatpush1.msra.mxu0 %v554
  %593 = vmatprep.subr.mxu0 0.0
  %594 = vmatpush1.msra.mxu0 0.0
  %595 = vmatprep.subr.mxu0 0.0
  %596 = vmatpush1.msra.mxu0 0.0
  %597 = vmatprep.subr.mxu0 0.0
  %598 = vmatpush1.msra.mxu0 0.0
  %599 = vmatprep.subr.mxu0 0.0
  %600 = vmatpush1.msra.mxu0 0.0
  %601 = vmatprep.subr.mxu0 0.0
  %602 = vmatpush1.msra.mxu0 0.0
  %603 = vmatprep.subr.mxu0 0.0
  %604 = vmatpush1.msra.mxu0 0.0
  %605 = vmatprep.subr.mxu0 0.0
  %606 = vmatpush1.msra.mxu0 0.0
  %607 = vmatprep.subr.mxu0 0.0
  %608 = vmatpush1.msra.mxu0 0.0
  %609 = vmatprep.subr.mxu0 0.0
  %610 = vmatpush1.msra.mxu0 0.0
  %611 = vmatprep.subr.mxu0 0.0
  %612 = vmatpush1.msra.mxu0 0.0
  %613 = vmatprep.subr.mxu0 0.0
  %614 = vmatpush1.msra.mxu0 0.0
  %615 = vmatprep.subr.mxu0 0.0
  %616 = vmatpush1.msra.mxu0 0.0
  %617 = vmatprep.subr.mxu0 0.0
  %618 = vmatpush1.msra.mxu0 0.0
  %619 = vmatprep.subr.mxu0 0.0
  %620 = vmatpush1.msra.mxu0 0.0
  %621 = vmatprep.subr.mxu0 0.0
  %622 = vmatpush1.msra.mxu0 0.0
  %623 = vmatprep.subr.mxu0 0.0
  %624 = vmatpush1.msra.mxu0 0.0
  %625 = vmatprep.subr.mxu0 0.0
  %626 = vmatpush1.msra.mxu0 0.0
  %627 = vmatprep.subr.mxu0 0.0
  %628 = vmatpush1.msra.mxu0 0.0
  %629 = vmatprep.subr.mxu0 0.0
  %630 = vmatpush1.msra.mxu0 0.0
  %631 = vmatprep.subr.mxu0 0.0
  %632 = vmatpush1.msra.mxu0 0.0
  %633 = vmatprep.subr.mxu0 0.0
  %634 = vmatpush1.msra.mxu0 0.0
  %635 = vmatprep.subr.mxu0 0.0
  %636 = vmatpush1.msra.mxu0 0.0
  %637 = vmatprep.subr.mxu0 0.0
  %638 = vmatpush1.msra.mxu0 0.0
  %639 = vmatprep.subr.mxu0 0.0
  %640 = vmatpush1.msra.mxu0 0.0
  %641 = vmatprep.subr.mxu0 0.0
  %642 = vmatpush1.msra.mxu0 0.0
  %643 = vmatprep.subr.mxu0 0.0
  %644 = vmatpush1.msra.mxu0 0.0
  %645 = vmatprep.subr.mxu0 0.0
  %646 = vmatpush1.msra.mxu0 0.0
  %647 = vmatprep.subr.mxu0 0.0
  %648 = vmatpush1.msra.mxu0 0.0
  %649 = vmatprep.mubr.f32.mxu0 0.0
  %650 = vmatmul.mubr.f32.gmra.mrb[0].mxu0 %v556
  %v651 = vpop.f32.mrb[0].mxu0
  %v652 = vadd.f32 0.0, %v651
  %v653 = vpop.f32.mrb[0].mxu0
  %654 = vmatprep.mubr.f32.mxu0 0.0
  %655 = vmatmul.mubr.f32.gmra.mrb[0].mxu0 %v559
  %v656 = vpop.f32.mrb[0].mxu0
  %v657 = vadd.f32 0.0, %v656
  %v658 = vpop.f32.mrb[0].mxu0
  %659 = vmatprep.mubr.f32.mxu0 0.0
  %660 = vmatmul.mubr.f32.gmra.mrb[0].mxu0 %v562
  %v661 = vpop.f32.mrb[0].mxu0
  %v662 = vadd.f32 0.0, %v661
  %v663 = vpop.f32.mrb[0].mxu0
  %664 = vmatprep.mubr.f32.mxu0 0.0
  %665 = vmatmul.mubr.f32.gmra.mrb[0].mxu0 %v565
  %v666 = vpop.f32.mrb[0].mxu0
  %v667 = vadd.f32 0.0, %v666
  %v668 = vpop.f32.mrb[0].mxu0
  %669 = vmatprep.mubr.f32.mxu0 0.0
  %670 = vmatmul.mubr.f32.gmra.mrb[0].mxu0 %v568
  %v671 = vpop.f32.mrb[0].mxu0
  %v672 = vadd.f32 0.0, %v671
  %v673 = vpop.f32.mrb[0].mxu0
  %674 = vmatprep.mubr.f32.mxu0 0.0
  %675 = vmatmul.mubr.f32.gmra.mrb[0].mxu0 %v571
  %v676 = vpop.f32.mrb[0].mxu0
  %v677 = vadd.f32 0.0, %v676
  %v678 = vpop.f32.mrb[0].mxu0
  %679 = vmatprep.mubr.f32.mxu0 0.0
  %680 = vmatmul.mubr.f32.gmra.mrb[0].mxu0 %v574
  %v681 = vpop.f32.mrb[0].mxu0
  %v682 = vadd.f32 0.0, %v681
  %v683 = vpop.f32.mrb[0].mxu0
  %684 = vmatprep.mubr.f32.mxu0 0.0
  %685 = vmatmul.mubr.f32.gmra.mrb[0].mxu0 %v577
  %v686 = vpop.f32.mrb[0].mxu0
  %v687 = vadd.f32 0.0, %v686
  %v688 = vpop.f32.mrb[0].mxu0
  %689 = vmatprep.mubr.f32.mxu0 0.0
  %690 = vmatmul.mubr.f32.gmra.mrb[0].mxu0 %v580
  %v691 = vpop.f32.mrb[0].mxu0
  %v692 = vadd.f32 0.0, %v691
  %v693 = vpop.f32.mrb[0].mxu0
  %694 = vmatprep.mubr.f32.mxu0 0.0
  %695 = vmatmul.mubr.f32.gmra.mrb[0].mxu0 %v583
  %v696 = vpop.f32.mrb[0].mxu0
  %v697 = vadd.f32 0.0, %v696
  %v698 = vpop.f32.mrb[0].mxu0
  %699 = vdwg.mxu0
  %v700 = vadd.f32 %v529, %v652
  %v701 = vadd.f32 %v530, %v657
  %v702 = vadd.f32 %v531, %v662
  %v703 = vadd.f32 %v532, %v667
  %v704 = vadd.f32 %v533, %v672
  %v705 = vadd.f32 %v534, %v677
  %v706 = vadd.f32 %v535, %v682
  %v707 = vadd.f32 %v536, %v687
  %v708 = vadd.f32 %v537, %v692
  %v709 = vadd.f32 %v538, %v697
  %s710 = scalar_lea.vmem [#allocation2], 32
  %v711 = vld [vmem:[%s710] sm:$0xff]
  %v712 = vld [vmem:[%s710 + $0x8] sm:$0xff]
  %v713 = vld [vmem:[%s710 + $0x10] sm:$0xff]
  %v714 = vld [vmem:[%s710 + $0x18] sm:$0xff]
  %v715 = vld [vmem:[%s710 + $0x20] sm:$0xff]
  %v716 = vld [vmem:[%s710 + $0x28] sm:$0xff]
  %v717 = vld [vmem:[%s710 + $0x30] sm:$0xff]
  %v718 = vld [vmem:[%s710 + $0x38] sm:$0xff]
  %v719 = vld [vmem:[%s710 + $0x40] sm:$0xff]
  %v720 = vld [vmem:[%s710 + $0x48] sm:$0xff]
  %s721 = scalar_lea.vmem %s1, 128
  %v722 = vld [vmem:[%s721] sm:$0xff]
  %v723 = vld [vmem:[%s721 + $0x8] sm:$0xff]
  %v724 = vld [vmem:[%s721 + $0x10] sm:$0xff]
  %v725 = vld [vmem:[%s721 + $0x18] sm:$0xff]
  %v727 = vsel %vm24, %v711, 0
  %v730 = vsel %vm24, %v712, 0
  %v733 = vsel %vm24, %v713, 0
  %v736 = vsel %vm24, %v714, 0
  %v739 = vsel %vm24, %v715, 0
  %v742 = vsel %vm24, %v716, 0
  %v745 = vsel %vm24, %v717, 0
  %v748 = vsel %vm24, %v718, 0
  %v751 = vsel %vm24, %v719, 0
  %v754 = vsel %vm24, %v720, 0
  %756 = vmatprep.subr.mxu0 0.0
  %757 = vmatpush1.msra.mxu0 %v722
  %758 = vmatprep.subr.mxu0 0.0
  %759 = vmatpush1.msra.mxu0 %v723
  %760 = vmatprep.subr.mxu0 0.0
  %761 = vmatpush1.msra.mxu0 %v724
  %762 = vmatprep.subr.mxu0 0.0
  %763 = vmatpush1.msra.mxu0 %v725
  %764 = vmatprep.subr.mxu0 0.0
  %765 = vmatpush1.msra.mxu0 0.0
  %766 = vmatprep.subr.mxu0 0.0
  %767 = vmatpush1.msra.mxu0 0.0
  %768 = vmatprep.subr.mxu0 0.0
  %769 = vmatpush1.msra.mxu0 0.0
  %770 = vmatprep.subr.mxu0 0.0
  %771 = vmatpush1.msra.mxu0 0.0
  %772 = vmatprep.subr.mxu0 0.0
  %773 = vmatpush1.msra.mxu0 0.0
  %774 = vmatprep.subr.mxu0 0.0
  %775 = vmatpush1.msra.mxu0 0.0
  %776 = vmatprep.subr.mxu0 0.0
  %777 = vmatpush1.msra.mxu0 0.0
  %778 = vmatprep.subr.mxu0 0.0
  %779 = vmatpush1.msra.mxu0 0.0
  %780 = vmatprep.subr.mxu0 0.0
  %781 = vmatpush1.msra.mxu0 0.0
  %782 = vmatprep.subr.mxu0 0.0
  %783 = vmatpush1.msra.mxu0 0.0
  %784 = vmatprep.subr.mxu0 0.0
  %785 = vmatpush1.msra.mxu0 0.0
  %786 = vmatprep.subr.mxu0 0.0
  %787 = vmatpush1.msra.mxu0 0.0
  %788 = vmatprep.subr.mxu0 0.0
  %789 = vmatpush1.msra.mxu0 0.0
  %790 = vmatprep.subr.mxu0 0.0
  %791 = vmatpush1.msra.mxu0 0.0
  %792 = vmatprep.subr.mxu0 0.0
  %793 = vmatpush1.msra.mxu0 0.0
  %794 = vmatprep.subr.mxu0 0.0
  %795 = vmatpush1.msra.mxu0 0.0
  %796 = vmatprep.subr.mxu0 0.0
  %797 = vmatpush1.msra.mxu0 0.0
  %798 = vmatprep.subr.mxu0 0.0
  %799 = vmatpush1.msra.mxu0 0.0
  %800 = vmatprep.subr.mxu0 0.0
  %801 = vmatpush1.msra.mxu0 0.0
  %802 = vmatprep.subr.mxu0 0.0
  %803 = vmatpush1.msra.mxu0 0.0
  %804 = vmatprep.subr.mxu0 0.0
  %805 = vmatpush1.msra.mxu0 0.0
  %806 = vmatprep.subr.mxu0 0.0
  %807 = vmatpush1.msra.mxu0 0.0
  %808 = vmatprep.subr.mxu0 0.0
  %809 = vmatpush1.msra.mxu0 0.0
  %810 = vmatprep.subr.mxu0 0.0
  %811 = vmatpush1.msra.mxu0 0.0
  %812 = vmatprep.subr.mxu0 0.0
  %813 = vmatpush1.msra.mxu0 0.0
  %814 = vmatprep.subr.mxu0 0.0
  %815 = vmatpush1.msra.mxu0 0.0
  %816 = vmatprep.subr.mxu0 0.0
  %817 = vmatpush1.msra.mxu0 0.0
  %818 = vmatprep.subr.mxu0 0.0
  %819 = vmatpush1.msra.mxu0 0.0
  %820 = vmatprep.mubr.f32.mxu0 0.0
  %821 = vmatmul.mubr.f32.gmra.mrb[0].mxu0 %v727
  %v822 = vpop.f32.mrb[0].mxu0
  %v823 = vadd.f32 0.0, %v822
  %v824 = vpop.f32.mrb[0].mxu0
  %825 = vmatprep.mubr.f32.mxu0 0.0
  %826 = vmatmul.mubr.f32.gmra.mrb[0].mxu0 %v730
  %v827 = vpop.f32.mrb[0].mxu0
  %v828 = vadd.f32 0.0, %v827
  %v829 = vpop.f32.mrb[0].mxu0
  %830 = vmatprep.mubr.f32.mxu0 0.0
  %831 = vmatmul.mubr.f32.gmra.mrb[0].mxu0 %v733
  %v832 = vpop.f32.mrb[0].mxu0
  %v833 = vadd.f32 0.0, %v832
  %v834 = vpop.f32.mrb[0].mxu0
  %835 = vmatprep.mubr.f32.mxu0 0.0
  %836 = vmatmul.mubr.f32.gmra.mrb[0].mxu0 %v736
  %v837 = vpop.f32.mrb[0].mxu0
  %v838 = vadd.f32 0.0, %v837
  %v839 = vpop.f32.mrb[0].mxu0
  %840 = vmatprep.mubr.f32.mxu0 0.0
  %841 = vmatmul.mubr.f32.gmra.mrb[0].mxu0 %v739
  %v842 = vpop.f32.mrb[0].mxu0
  %v843 = vadd.f32 0.0, %v842
  %v844 = vpop.f32.mrb[0].mxu0
  %845 = vmatprep.mubr.f32.mxu0 0.0
  %846 = vmatmul.mubr.f32.gmra.mrb[0].mxu0 %v742
  %v847 = vpop.f32.mrb[0].mxu0
  %v848 = vadd.f32 0.0, %v847
  %v849 = vpop.f32.mrb[0].mxu0
  %850 = vmatprep.mubr.f32.mxu0 0.0
  %851 = vmatmul.mubr.f32.gmra.mrb[0].mxu0 %v745
  %v852 = vpop.f32.mrb[0].mxu0
  %v853 = vadd.f32 0.0, %v852
  %v854 = vpop.f32.mrb[0].mxu0
  %855 = vmatprep.mubr.f32.mxu0 0.0
  %856 = vmatmul.mubr.f32.gmra.mrb[0].mxu0 %v748
  %v857 = vpop.f32.mrb[0].mxu0
  %v858 = vadd.f32 0.0, %v857
  %v859 = vpop.f32.mrb[0].mxu0
  %860 = vmatprep.mubr.f32.mxu0 0.0
  %861 = vmatmul.mubr.f32.gmra.mrb[0].mxu0 %v751
  %v862 = vpop.f32.mrb[0].mxu0
  %v863 = vadd.f32 0.0, %v862
  %v864 = vpop.f32.mrb[0].mxu0
  %865 = vmatprep.mubr.f32.mxu0 0.0
  %866 = vmatmul.mubr.f32.gmra.mrb[0].mxu0 %v754
  %v867 = vpop.f32.mrb[0].mxu0
  %v868 = vadd.f32 0.0, %v867
  %v869 = vpop.f32.mrb[0].mxu0
  %870 = vdwg.mxu0
  %v871 = vadd.f32 %v700, %v823
  %v872 = vadd.f32 %v701, %v828
  %v873 = vadd.f32 %v702, %v833
  %v874 = vadd.f32 %v703, %v838
  %v875 = vadd.f32 %v704, %v843
  %v876 = vadd.f32 %v705, %v848
  %v877 = vadd.f32 %v706, %v853
  %v878 = vadd.f32 %v707, %v858
  %v879 = vadd.f32 %v708, %v863
  %v880 = vadd.f32 %v709, %v868
  %v881 = vld [vmem:[%s3] sm:$0x1]
  %v882 = vld [vmem:[%s3 + $0x1] sm:$0x1]
  %v883 = vld [vmem:[%s3 + $0x2] sm:$0x1]
  %v884 = vld [vmem:[%s3 + $0x3] sm:$0x1]
  %v885 = vld [vmem:[%s3 + $0x4] sm:$0x1]
  %v886 = vld [vmem:[%s3 + $0x5] sm:$0x1]
  %v887 = vld [vmem:[%s3 + $0x6] sm:$0x1]
  %v888 = vld [vmem:[%s3 + $0x7] sm:$0x1]
  %v889 = vld [vmem:[%s3 + $0x8] sm:$0x1]
  %v890 = vld [vmem:[%s3 + $0x9] sm:$0x1]
  %v901 = vlaneseq
  %v902 = vshrl.u32 %v901, 7
  %v903 = vsub.s32 0, %v902
  %v904 = vrot.slane %v881, %v903
  %v905 = vlaneseq
  %v906 = vshrl.u32 %v905, 7
  %v907 = vsub.s32 0, %v906
  %v908 = vrot.slane %v882, %v907
  %v909 = vlaneseq
  %v910 = vshrl.u32 %v909, 7
  %v911 = vsub.s32 0, %v910
  %v912 = vrot.slane %v883, %v911
  %v913 = vlaneseq
  %v914 = vshrl.u32 %v913, 7
  %v915 = vsub.s32 0, %v914
  %v916 = vrot.slane %v884, %v915
  %v917 = vlaneseq
  %v918 = vshrl.u32 %v917, 7
  %v919 = vsub.s32 0, %v918
  %v920 = vrot.slane %v885, %v919
  %v921 = vlaneseq
  %v922 = vshrl.u32 %v921, 7
  %v923 = vsub.s32 0, %v922
  %v924 = vrot.slane %v886, %v923
  %v925 = vlaneseq
  %v926 = vshrl.u32 %v925, 7
  %v927 = vsub.s32 0, %v926
  %v928 = vrot.slane %v887, %v927
  %v929 = vlaneseq
  %v930 = vshrl.u32 %v929, 7
  %v931 = vsub.s32 0, %v930
  %v932 = vrot.slane %v888, %v931
  %v933 = vlaneseq
  %v934 = vshrl.u32 %v933, 7
  %v935 = vsub.s32 0, %v934
  %v936 = vrot.slane %v889, %v935
  %v937 = vlaneseq
  %v938 = vshrl.u32 %v937, 7
  %v939 = vsub.s32 0, %v938
  %v940 = vrot.slane %v890, %v939
  %v951 = vadd.f32 %v871, %v904
  %v952 = vadd.f32 %v872, %v908
  %v953 = vadd.f32 %v873, %v912
  %v954 = vadd.f32 %v874, %v916
  %v955 = vadd.f32 %v875, %v920
  %v956 = vadd.f32 %v876, %v924
  %v957 = vadd.f32 %v877, %v928
  %v958 = vadd.f32 %v878, %v932
  %v959 = vadd.f32 %v879, %v936
  %v960 = vadd.f32 %v880, %v940
  %vm961 = vcmask 392192
  %v962 = vsel %vm961, %v951, -inf
  %v963 = vsel %vm961, %v952, -inf
  %v964 = vsel %vm961, %v953, -inf
  %v965 = vsel %vm961, %v954, -inf
  %v966 = vsel %vm961, %v955, -inf
  %v967 = vmax.f32 %v962, %v966
  %v968 = vsel %vm961, %v956, -inf
  %v969 = vmax.f32 %v963, %v968
  %v970 = vsel %vm961, %v957, -inf
  %v971 = vmax.f32 %v964, %v970
  %v972 = vsel %vm961, %v958, -inf
  %v973 = vmax.f32 %v965, %v972
  %v974 = vsel %vm961, %v959, -inf
  %v975 = vmax.f32 %v967, %v974
  %v976 = vsel %vm961, %v960, -inf
  %v977 = vmax.f32 %v969, %v976
  %v978 = vmax.f32 %v975, %v977
  %v979 = vmax.f32 %v971, %v973
  %v980 = vmax.f32 %v978, %v979
  %v981 = vld [vmem:[%s2] sm:$0x1]
  %v983 = vlaneseq
  %v984 = vshrl.u32 %v983, 7
  %v985 = vsub.s32 0, %v984
  %v986 = vrot.slane %v981, %v985
  %v988 = vadd.f32 %v980, %v986
  %vm989 = vcmp.gt.f32.partialorder %v988, 0.0
  %v990 = vmul.f32 %v988, 0.01
  %v991 = vsel %vm989, %v988, %v990
  %v992 = vld [vmem:[%s4] sm:$0x1]
  %v994 = vlaneseq
  %v995 = vshrl.u32 %v994, 7
  %v996 = vsub.s32 0, %v995
  %v997 = vrot.slane %v992, %v996
  %v999 = vmul.f32 %v991, %v997
  %v1000 = vsel %vm961, %v999, 0.0
  %1001 = vadd.xlane.f32.xlu0 %v1000
  %v1002 = vpop.xlane.xlu0 %1001
  %s1003 = sld [smem:[#allocation3]]
  %v1004 = vstv %s1003
  %v1005 = vadd.f32 %v1002, %v1004
  %vm1006 = vcmask 7168
  %1007 = vst.msk [vmem:[%s6] sm:$0xff] %vm1006, %v1005
  // Predicated region
  $region26: #{discriminator_forward.1} parent=0 // pred_check
    _
  $region27: #{discriminator_forward.1} parent=0 // pred_check_branch
    %1009 = sbr.rel (0) target = $region29
  $region28: #{discriminator_forward.1} parent=0 // pred_region
    _
  $region29: #{discriminator_forward.1} parent=0 // pred_fallthru
    _
  // Predicated region
  $region30: #{discriminator_forward.1} parent=0 // pred_check
    _
  $region31: #{discriminator_forward.1} parent=0 // pred_check_branch
    %1011 = sbr.rel (0) target = $region33
  $region32: #{discriminator_forward.1} parent=0 // pred_region
    _
  $region33: #{discriminator_forward.1} parent=0 // pred_fallthru
    _

</llo_original>
